<compile_context>
chip_gen: v7x
topology: tpu7x:2x2x1
jax: 0.10.0
libtpu: 0.0.40
codegen_flags: <defaults>
</compile_context>

<pallas_src>
import functools

import jax
import jax.numpy as jnp
from jax import lax
from jax.experimental import pallas as pl
from jax.experimental.pallas import tpu as pltpu


def _ceil_to(x, m):
    return -(-x // m) * m


def _make_kernel(v_total, v_padded, tv, nv):
    """Kernel factory; closes over static vocab sizes / tile counts."""
    needs_col_mask = v_padded > v_total

    def kernel(m_ref, w_ref, b_ref, mask_ref, out_ref, s_scr, mmax_ref, lsum_ref):
        # m_ref:    [tb, 3H]   concatenated embeddings (bf16), resident over V
        # w_ref:    [3H, tv]   weight column tile (bf16), streamed (2-buffered)
        # b_ref:    [1,  tv]   bias tile (f32)
        # mask_ref: [tb, tv]   copy_vocabulary tile (int8), cast in-kernel
        # out_ref:  [tb, Vp]   VMEM-resident output row block (written at end)
        # s_scr:    [nv, tb, tv] f32 raw-score stash (leading-dim indexed)
        # mmax_ref / lsum_ref: [tb, 1] running softmax max / sum
        j = pl.program_id(1)

        @pl.when(j == 0)
        def _init():
            mmax_ref[...] = jnp.full_like(mmax_ref, -jnp.inf)
            lsum_ref[...] = jnp.zeros_like(lsum_ref)

        # One full-depth (K = 3H) MXU dot, f32 accumulate.
        logits = jnp.dot(m_ref[...], w_ref[...],
                         preferred_element_type=jnp.float32) + b_ref[...]
        score = jnp.maximum(logits, 0.0) + mask_ref[...].astype(jnp.float32)

        if needs_col_mask:
            # Exclude padded vocabulary columns (only the last tile has any).
            col = j * tv + lax.broadcasted_iota(jnp.int32, score.shape, 1)
            score = jnp.where(col < v_total, score, -jnp.inf)

        # Online softmax statistics.
        m_prev = mmax_ref[...]
        m_new = jnp.maximum(m_prev, jnp.max(score, axis=-1, keepdims=True))
        lsum_ref[...] = (lsum_ref[...] * jnp.exp(m_prev - m_new)
                         + jnp.sum(jnp.exp(score - m_new), axis=-1, keepdims=True))
        mmax_ref[...] = m_new

        # Stash the raw score tile (dynamic index on the leading scratch dim
        # only -> values keep their natural (tb, tv) layout).
        s_scr[j] = score

        @pl.when(j == nv - 1)
        def _finalize():
            m_fin = mmax_ref[...]
            inv_l = pl.reciprocal(lsum_ref[...], approx=True)
            # Static Python loop -> static slices into the resident out block.
            for jj in range(nv):
                e = jnp.exp(s_scr[jj] - m_fin) * inv_l
                out_ref[:, jj * tv:(jj + 1) * tv] = e.astype(out_ref.dtype)

    return kernel


@functools.partial(jax.jit, static_argnames=("entity", "block_b", "block_v",
                                              "compute_dtype", "out_dtype"))
def global_mode_forward(s_embed, rel_embed, o_embed, time_embed,
                        copy_vocabulary, params, entity="object",
                        block_b=None, block_v=None,
                        compute_dtype=jnp.bfloat16, out_dtype=jnp.float32):
    """JAX/Pallas equivalent of Global_mode.forward."""
    if entity == "object":
        m_t = jnp.concatenate((s_embed, rel_embed, time_embed), axis=1)
    elif entity == "subject":
        m_t = jnp.concatenate((rel_embed, o_embed, time_embed), axis=1)
    else:
        raise ValueError("entity must be 'object' or 'subject'")
    m_t = m_t.astype(compute_dtype)

    w = params["W_s_weight_T"].astype(compute_dtype)            # [3H, V]
    b = params["W_s_bias"].reshape(1, -1).astype(jnp.float32)   # [1, V]

    mask = copy_vocabulary
    if mask.dtype == jnp.bool_:
        mask = mask.astype(jnp.int8)        # keep the mask stream narrow

    B, K = m_t.shape
    Kw, V = w.shape
    assert K == Kw, "weight must be [3*hidden_dim, output_dim] (transposed)"
    assert mask.shape == (B, V)

    LANE = 128
    cbytes = jnp.dtype(compute_dtype).itemsize
    obytes = jnp.dtype(out_dtype).itemsize
    mbytes = jnp.dtype(mask.dtype).itemsize

    # --- generation-aware VMEM budget --------------------------------------
    try:
        vmem_cap = int(pltpu.get_tpu_info().vmem_capacity_bytes)
    except Exception:
        vmem_cap = 64 << 20                 # conservative fallback (v7x)

    # --- vocabulary tile: aim for ~512 KiB weight column tiles --------------
    if block_v is not None:
        tv = int(block_v)
    elif V <= LANE:
        tv = V                              # single full-width tile
    else:
        tgt = max((512 * 1024) // max(K * cbytes, 1), LANE)
        tv = min(max((tgt // LANE) * LANE, LANE), 2048, _ceil_to(V, LANE))
    Vp = _ceil_to(V, tv)
    nv = Vp // tv

    def footprint(tb):
        return (2 * tb * Vp * obytes        # resident output row block (x2 bufs)
                + tb * Vp * 4               # f32 score stash scratch
                + 2 * tb * K * cbytes       # m_t tiles
                + 2 * K * tv * cbytes       # weight column tiles
                + 2 * tv * 4                # bias tiles
                + 2 * tb * tv * mbytes      # mask tiles
                + 4 * tb * 4                # running max / sum scratch
                + 3 * tb * tv * 4)          # in-kernel f32 temporaries

    # --- batch tile (prefer no padding; shrink until the footprint fits) ----
    if block_b is not None:
        tb = int(block_b)
    else:
        cands = []
        if B <= 128:
            cands.append(B)                 # full-dim block -> no padding/copy
        cands += [c for c in (128, 64, 32, 16, 8) if c < B and B % c == 0]
        cands += [c for c in (128, 64, 32, 16, 8) if c < B]
        if not cands:
            cands = [B]
        tb = cands[-1]
        for c in cands:
            if footprint(c) <= int(0.80 * vmem_cap):
                tb = c
                break

    Bp = _ceil_to(B, tb)
    pad_b, pad_v = Bp - B, Vp - V
    if pad_b:
        m_t = jnp.pad(m_t, ((0, pad_b), (0, 0)))
        mask = jnp.pad(mask, ((0, pad_b), (0, 0)))
    if pad_v:
        w = jnp.pad(w, ((0, 0), (0, pad_v)))
        b = jnp.pad(b, ((0, 0), (0, pad_v)))
        mask = jnp.pad(mask, ((0, 0), (0, pad_v)))

    vmem_limit = int(min(max(footprint(tb) + (2 << 20), 32 << 20),
                         int(0.90 * vmem_cap)))

    out = pl.pallas_call(
        _make_kernel(V, Vp, tv, nv),
        out_shape=jax.ShapeDtypeStruct((Bp, Vp), out_dtype),
        grid_spec=pltpu.PrefetchScalarGridSpec(
            num_scalar_prefetch=0,
            grid=(Bp // tb, nv),
            in_specs=[
                pl.BlockSpec((tb, K), lambda i, j: (i, 0)),    # m_t (held over V)
                pl.BlockSpec((K, tv), lambda i, j: (0, j)),    # weight col tile
                pl.BlockSpec((1, tv), lambda i, j: (0, j)),    # bias tile
                pl.BlockSpec((tb, tv), lambda i, j: (i, j)),   # mask tile (int8)
            ],
            out_specs=pl.BlockSpec((tb, Vp), lambda i, j: (i, 0)),
            scratch_shapes=[
                pltpu.VMEM((nv, tb, tv), jnp.float32),   # raw-score stash
                pltpu.VMEM((tb, 1), jnp.float32),        # running max
                pltpu.VMEM((tb, 1), jnp.float32),        # running sum
            ],
        ),
        compiler_params=pltpu.CompilerParams(
            dimension_semantics=("parallel", "arbitrary"),
            vmem_limit_bytes=vmem_limit,
        ),
    )(m_t, w, b, mask)

    if pad_b or pad_v:
        out = out[:B, :V]
    return out


def init_params(key, hidden_dim, output_dim):
    """Deterministic init mimicking nn.Linear(hidden_dim*3, output_dim)."""
    fan_in = hidden_dim * 3
    bound = 1.0 / jnp.sqrt(fan_in)
    k_w, k_b = jax.random.split(key)
    # PyTorch stores weight as [out, in]; we store the transpose [in, out].
    w_t = jax.random.uniform(k_w, (fan_in, output_dim), jnp.float32,
                             minval=-bound, maxval=bound)
    b = jax.random.uniform(k_b, (output_dim,), jnp.float32,
                           minval=-bound, maxval=bound)
    return {"W_s_weight_T": w_t, "W_s_bias": b}


def _reference(s_embed, rel_embed, o_embed, time_embed, cv, params, entity):
    """Pure-JAX f32 reference of the PyTorch forward."""
    if entity == "object":
        m_t = jnp.concatenate((s_embed, rel_embed, time_embed), axis=1)
    else:
        m_t = jnp.concatenate((rel_embed, o_embed, time_embed), axis=1)
    q_s = jax.nn.relu(m_t @ params["W_s_weight_T"] + params["W_s_bias"])
    score = q_s + cv.astype(jnp.float32)
    return jax.nn.softmax(score, axis=1)


if __name__ == "__main__":
    key = jax.random.PRNGKey(0)
    B = 8           # batch
    H = 32          # hidden_dim
    V = 256         # output_dim (num entities / vocabulary size)

    k0, k1, k2, k3, k4, k5 = jax.random.split(key, 6)
    s_embed = jax.random.normal(k0, (B, H), jnp.float32)
    rel_embed = jax.random.normal(k1, (B, H), jnp.float32)
    o_embed = jax.random.normal(k2, (B, H), jnp.float32)
    time_embed = jax.random.normal(k3, (B, H), jnp.float32)
    # copy_vocabulary: binary mask over the vocabulary, kept narrow (int8).
    copy_vocabulary = (jax.random.uniform(k4, (B, V)) > 0.5).astype(jnp.int8)

    params = init_params(k5, H, V)

    out = global_mode_forward(s_embed, rel_embed, o_embed, time_embed,
                              copy_vocabulary, params, entity="object")
    out = jax.block_until_ready(out)

    ref = _reference(s_embed, rel_embed, o_embed, time_embed,
                     copy_vocabulary, params, "object")
    assert out.shape == (B, V)
    # Tolerance accounts for bf16 MXU operands + approx reciprocal.
    assert jnp.allclose(out, ref, atol=2e-3, rtol=2e-2), "mismatch vs reference"

    # also exercise the 'subject' branch once
    out2 = jax.block_until_ready(
        global_mode_forward(s_embed, rel_embed, o_embed, time_embed,
                            copy_vocabulary, params, entity="subject"))
    ref2 = _reference(s_embed, rel_embed, o_embed, time_embed,
                      copy_vocabulary, params, "subject")
    assert jnp.allclose(out2, ref2, atol=2e-3, rtol=2e-2)

    print("KERNEL_OK")
</pallas_src>

<mosaic_0001>
module attributes {stable_mosaic.version = 11 : i64} {
  func.func @kernel(%arg0: i32, %arg1: i32, %arg2: memref<8x96xbf16, #tpu.memory_space<vmem>>, %arg3: memref<96x256xbf16, #tpu.memory_space<vmem>>, %arg4: memref<1x256xf32, #tpu.memory_space<vmem>>, %arg5: memref<8x256xi8, #tpu.memory_space<vmem>>, %arg6: memref<8x256xf32, #tpu.memory_space<vmem>>, %arg7: memref<1x8x256xf32, #tpu.memory_space<vmem>>, %arg8: memref<8x1xf32, #tpu.memory_space<vmem>>, %arg9: memref<8x1xf32, #tpu.memory_space<vmem>>) attributes {dimension_semantics = [#tpu.dimension_semantics<parallel>, #tpu.dimension_semantics<arbitrary>], iteration_bounds = array<i64: 1, 1>, scalar_prefetch = 0 : i64, scratch_operands = 3 : i64, tpu.core_type = #tpu.core_type<tc>, window_params = [{transform_indices = @transform_0, window_bounds = array<i64: 8, 96>}, {transform_indices = @transform_1, window_bounds = array<i64: 96, 256>}, {transform_indices = @transform_2, window_bounds = array<i64: 1, 256>}, {transform_indices = @transform_3, window_bounds = array<i64: 8, 256>}, {transform_indices = @transform_4, window_bounds = array<i64: 8, 256>}]} {
    %c0_i32 = arith.constant 0 : i32
    %0 = arith.cmpi eq, %arg1, %c0_i32 : i32
    %1 = arith.extui %0 : i1 to i32
    %c0_i32_0 = arith.constant 0 : i32
    %2 = arith.cmpi ne, %1, %c0_i32_0 : i32
    scf.if %2 {
      %cst_23 = arith.constant 0xFF800000 : f32
      %37 = vector.broadcast %cst_23 : f32 to vector<8x1xf32>
      %c0_24 = arith.constant 0 : index
      %c0_25 = arith.constant 0 : index
      %38 = vector.load %arg8[%c0_24, %c0_25] : memref<8x1xf32, #tpu.memory_space<vmem>>, vector<8x1xf32>
      tpu.vector_store %arg8[%c0_24, %c0_25], %37 {strides = array<i32>} : memref<8x1xf32, #tpu.memory_space<vmem>>, vector<8x1xf32>,
      %cst_26 = arith.constant 0.000000e+00 : f32
      %39 = vector.broadcast %cst_26 : f32 to vector<8x1xf32>
      %c0_27 = arith.constant 0 : index
      %c0_28 = arith.constant 0 : index
      %40 = vector.load %arg9[%c0_27, %c0_28] : memref<8x1xf32, #tpu.memory_space<vmem>>, vector<8x1xf32>
      tpu.vector_store %arg9[%c0_27, %c0_28], %39 {strides = array<i32>} : memref<8x1xf32, #tpu.memory_space<vmem>>, vector<8x1xf32>,
    } else {
    }
    %c0 = arith.constant 0 : index
    %c0_1 = arith.constant 0 : index
    %3 = vector.load %arg2[%c0, %c0_1] : memref<8x96xbf16, #tpu.memory_space<vmem>>, vector<8x96xbf16>
    %c0_2 = arith.constant 0 : index
    %c0_3 = arith.constant 0 : index
    %4 = vector.load %arg3[%c0_2, %c0_3] : memref<96x256xbf16, #tpu.memory_space<vmem>>, vector<96x256xbf16>
    %cst = arith.constant dense<0.000000e+00> : vector<8x256xf32>
    %5 = tpu.matmul %3, %4, %cst {dimension_numbers = #tpu.dot_dimension_numbers<[1], [0], [0], [1], [0, 0, 1, 1], [], []>} : vector<8x96xbf16>, vector<96x256xbf16>, vector<8x256xf32> -> vector<8x256xf32>
    %c0_4 = arith.constant 0 : index
    %c0_5 = arith.constant 0 : index
    %6 = vector.load %arg4[%c0_4, %c0_5] : memref<1x256xf32, #tpu.memory_space<vmem>>, vector<1x256xf32>
    %7 = vector.broadcast %6 : vector<1x256xf32> to vector<8x256xf32>
    %8 = arith.addf %5, %7 : vector<8x256xf32>
    %cst_6 = arith.constant 0.000000e+00 : f32
    %9 = vector.broadcast %cst_6 : f32 to vector<8x256xf32>
    %10 = arith.maximumf %8, %9 : vector<8x256xf32>
    %c0_7 = arith.constant 0 : index
    %c0_8 = arith.constant 0 : index
    %11 = vector.load %arg5[%c0_7, %c0_8] : memref<8x256xi8, #tpu.memory_space<vmem>>, vector<8x256xi8>
    %12 = arith.sitofp %11 : vector<8x256xi8> to vector<8x256xf32>
    %13 = arith.addf %10, %12 : vector<8x256xf32>
    %c0_9 = arith.constant 0 : index
    %c0_10 = arith.constant 0 : index
    %14 = vector.load %arg8[%c0_9, %c0_10] : memref<8x1xf32, #tpu.memory_space<vmem>>, vector<8x1xf32>
    %cst_11 = arith.constant dense<0xFF800000> : vector<8xf32>
    %15 = vector.multi_reduction <maximumf>, %13, %cst_11 [1] : vector<8x256xf32> to vector<8xf32>
    %16 = vector.shape_cast %15 : vector<8xf32> to vector<8x1xf32>
    %17 = arith.maximumf %14, %16 : vector<8x1xf32>
    %c0_12 = arith.constant 0 : index
    %c0_13 = arith.constant 0 : index
    %18 = vector.load %arg9[%c0_12, %c0_13] : memref<8x1xf32, #tpu.memory_space<vmem>>, vector<8x1xf32>
    %19 = arith.subf %14, %17 : vector<8x1xf32>
    %20 = math.exp %19 : vector<8x1xf32>
    %21 = arith.mulf %18, %20 : vector<8x1xf32>
    %22 = vector.broadcast %17 : vector<8x1xf32> to vector<8x256xf32>
    %23 = arith.subf %13, %22 : vector<8x256xf32>
    %24 = math.exp %23 : vector<8x256xf32>
    %cst_14 = arith.constant dense<0.000000e+00> : vector<8xf32>
    %25 = vector.multi_reduction <add>, %24, %cst_14 [1] : vector<8x256xf32> to vector<8xf32>
    %26 = vector.shape_cast %25 : vector<8xf32> to vector<8x1xf32>
    %27 = arith.addf %21, %26 : vector<8x1xf32>
    %c0_15 = arith.constant 0 : index
    %c0_16 = arith.constant 0 : index
    %28 = vector.load %arg9[%c0_15, %c0_16] : memref<8x1xf32, #tpu.memory_space<vmem>>, vector<8x1xf32>
    tpu.vector_store %arg9[%c0_15, %c0_16], %27 {strides = array<i32>} : memref<8x1xf32, #tpu.memory_space<vmem>>, vector<8x1xf32>,
    %c0_17 = arith.constant 0 : index
    %c0_18 = arith.constant 0 : index
    %29 = vector.load %arg8[%c0_17, %c0_18] : memref<8x1xf32, #tpu.memory_space<vmem>>, vector<8x1xf32>
    tpu.vector_store %arg8[%c0_17, %c0_18], %17 {strides = array<i32>} : memref<8x1xf32, #tpu.memory_space<vmem>>, vector<8x1xf32>,
    %30 = arith.index_cast %arg1 : i32 to index
    %c0_19 = arith.constant 0 : index
    %c0_20 = arith.constant 0 : index
    %31 = vector.load %arg7[%30, %c0_19, %c0_20] : memref<1x8x256xf32, #tpu.memory_space<vmem>>, vector<1x8x256xf32>
    %32 = vector.shape_cast %31 : vector<1x8x256xf32> to vector<8x256xf32>
    %33 = vector.shape_cast %13 : vector<8x256xf32> to vector<1x8x256xf32>
    tpu.vector_store %arg7[%30, %c0_19, %c0_20], %33 {strides = array<i32>} : memref<1x8x256xf32, #tpu.memory_space<vmem>>, vector<1x8x256xf32>,
    %c0_i32_21 = arith.constant 0 : i32
    %34 = arith.cmpi eq, %arg1, %c0_i32_21 : i32
    %35 = arith.extui %34 : i1 to i32
    %c0_i32_22 = arith.constant 0 : i32
    %36 = arith.cmpi ne, %35, %c0_i32_22 : i32
    scf.if %36 {
      %c0_23 = arith.constant 0 : index
      %c0_24 = arith.constant 0 : index
      %37 = vector.load %arg8[%c0_23, %c0_24] : memref<8x1xf32, #tpu.memory_space<vmem>>, vector<8x1xf32>
      %c0_25 = arith.constant 0 : index
      %c0_26 = arith.constant 0 : index
      %38 = vector.load %arg9[%c0_25, %c0_26] : memref<8x1xf32, #tpu.memory_space<vmem>>, vector<8x1xf32>
      %39 = tpu.reciprocal %38 {approx = true} : vector<8x1xf32> -> vector<8x1xf32>
      %c0_27 = arith.constant 0 : index
      %c0_28 = arith.constant 0 : index
      %c0_29 = arith.constant 0 : index
      %40 = vector.load %arg7[%c0_27, %c0_28, %c0_29] : memref<1x8x256xf32, #tpu.memory_space<vmem>>, vector<1x8x256xf32>
      %41 = vector.shape_cast %40 : vector<1x8x256xf32> to vector<8x256xf32>
      %42 = vector.broadcast %37 : vector<8x1xf32> to vector<8x256xf32>
      %43 = arith.subf %41, %42 : vector<8x256xf32>
      %44 = math.exp %43 : vector<8x256xf32>
      %45 = vector.broadcast %39 : vector<8x1xf32> to vector<8x256xf32>
      %46 = arith.mulf %44, %45 : vector<8x256xf32>
      %c0_30 = arith.constant 0 : index
      %c0_31 = arith.constant 0 : index
      %47 = vector.load %arg6[%c0_30, %c0_31] : memref<8x256xf32, #tpu.memory_space<vmem>>, vector<8x256xf32>
      tpu.vector_store %arg6[%c0_30, %c0_31], %46 {strides = array<i32>} : memref<8x256xf32, #tpu.memory_space<vmem>>, vector<8x256xf32>,
    } else {
    }
    return
  }
  func.func @transform_0(%arg0: i32, %arg1: i32) -> (i32, i32) {
    %c0_i32 = arith.constant 0 : i32
    %c0_i32_0 = arith.constant 0 : i32
    return %arg0, %c0_i32 : i32, i32
  }
  func.func @transform_1(%arg0: i32, %arg1: i32) -> (i32, i32) {
    %c0_i32 = arith.constant 0 : i32
    %c0_i32_0 = arith.constant 0 : i32
    return %c0_i32, %arg1 : i32, i32
  }
  func.func @transform_2(%arg0: i32, %arg1: i32) -> (i32, i32) {
    %c0_i32 = arith.constant 0 : i32
    %c0_i32_0 = arith.constant 0 : i32
    return %c0_i32, %arg1 : i32, i32
  }
  func.func @transform_3(%arg0: i32, %arg1: i32) -> (i32, i32) {
    %c0_i32 = arith.constant 0 : i32
    return %arg0, %arg1 : i32, i32
  }
  func.func @transform_4(%arg0: i32, %arg1: i32) -> (i32, i32) {
    %c0_i32 = arith.constant 0 : i32
    %c0_i32_0 = arith.constant 0 : i32
    return %arg0, %c0_i32 : i32, i32
  }
}

</mosaic_0001>

<llo_original>
// kernel: global_mode_forward.1
$region0: #{global_mode_forward.1}
  #allocation0 [shape = 'u32[]', space=smem, size = 0x4, offset = 0x4, fixed_abs, tag = 'smem constant byte address 0x4 - core index']
  #allocation1 [shape = 'u32[144,128]{1,0:T(1,128)}', space=vmem, size = 0x12000, scoped, tag = 'internal scratch']
  #allocation2 [shape = 'f32[1,8,256]{2,1,0:T(8,128)}', space=vmem, size = 0x2000, scoped, tag = 'scratch operand']
  #allocation3 [shape = 'f32[8,1]{1,0:T(8,128)}', space=vmem, size = 0x1000, scoped, tag = 'scratch operand']
  #allocation4 [shape = 'f32[8,1]{1,0:T(8,128)}', space=vmem, size = 0x1000, scoped, tag = 'scratch operand']
  %s0 = inlined_call_operand.vmem [shape: bf16[8,96], index: 0, kind: input, shape index: {}]
  %s1 = inlined_call_operand.vmem [shape: bf16[96,256], index: 1, kind: input, shape index: {}]
  %s2 = inlined_call_operand.vmem [shape: f32[1,256], index: 2, kind: input, shape index: {}]
  %s3 = inlined_call_operand.vmem [shape: s8[8,256], index: 3, kind: input, shape index: {}]
  %s4 = inlined_call_operand.hbm [shape: f32[8,256], index: 4, kind: output, shape index: {}]
  %s5 = sld [smem:[#allocation0]]
  $region34: #{global_mode_forward.1} parent=0
    _
  %s7 = ssub.s32 1, %s5
  %s8 = scalar_select 0, %s7, %s5
  $region1: #{global_mode_forward.1} parent=0
    #allocation5 [shape = 'u8[8192]{0}', space=vmem, size = 0x2000, scoped, tag = 'output window, operand 0, single buffered']
    #allocation6 [shape = 's32[1]{0}', space=sflag, size = 0x4, scoped, tag = 'scoped memory for global_mode_forward.1']
    %9 = vsyncpa [#allocation6], 0
    // Predicated region
    $region2: #{global_mode_forward.1} parent=1 // pred_check
      _
    $region3: #{global_mode_forward.1} parent=1 // pred_check_branch
      %11 = sbr.rel (0) target = $region5
    $region4: #{global_mode_forward.1} parent=1 // pred_region
      _
    $region5: #{global_mode_forward.1} parent=1 // pred_fallthru
      _
    // Predicated region
    $region6: #{global_mode_forward.1} parent=1 // pred_check
      _
    $region7: #{global_mode_forward.1} parent=1 // pred_check_branch
      %13 = sbr.rel (0) target = $region9
    $region8: #{global_mode_forward.1} parent=1 // pred_region
      _
    $region9: #{global_mode_forward.1} parent=1 // pred_fallthru
      _
    // Predicated region
    $region10: #{global_mode_forward.1} parent=1 // pred_check
      _
    $region11: #{global_mode_forward.1} parent=1 // pred_check_branch
      %15 = sbr.rel (0) target = $region13
    $region12: #{global_mode_forward.1} parent=1 // pred_region
      _
    $region13: #{global_mode_forward.1} parent=1 // pred_fallthru
      _
    // Predicated region
    $region14: #{global_mode_forward.1} parent=1 // pred_check
      _
    $region15: #{global_mode_forward.1} parent=1 // pred_check_branch
      %17 = sbr.rel (0) target = $region17
    $region16: #{global_mode_forward.1} parent=1 // pred_region
      _
    $region17: #{global_mode_forward.1} parent=1 // pred_fallthru
      _
    %p19 = scmp.eq.s32.totalorder 0, 0
    // Predicated region
    $region18: #{global_mode_forward.1} parent=1 // pred_check
      %p20 = pneg %p19
    $region19: #{global_mode_forward.1} parent=1 // pred_check_branch
      %22 = sbr.rel (%p20) target = $region21
    $region20: #{global_mode_forward.1} parent=1 // pred_region
      %vm23 = vcmask 7168
      %24 = vst.msk [vmem:[#allocation3] sm:$0xff] %vm23, -inf
      %25 = vst.msk [vmem:[#allocation4] sm:$0xff] %vm23, 0.0
    $region21: #{global_mode_forward.1} parent=1 // pred_fallthru
      _
    %v26 = vld [vmem:[%s0] sm:$0xf]
    %v27 = vld [vmem:[%s1] sm:$0xff]
    %v28 = vld [vmem:[%s1 + $0x8] sm:$0xff]
    %v29 = vld [vmem:[%s1 + $0x10] sm:$0xff]
    %v30 = vld [vmem:[%s1 + $0x18] sm:$0xff]
    %v31 = vld [vmem:[%s1 + $0x20] sm:$0xff]
    %v32 = vld [vmem:[%s1 + $0x28] sm:$0xff]
    %v33 = vld [vmem:[%s1 + $0x30] sm:$0xff]
    %v34 = vld [vmem:[%s1 + $0x38] sm:$0xff]
    %v35 = vld [vmem:[%s1 + $0x40] sm:$0xff]
    %v36 = vld [vmem:[%s1 + $0x48] sm:$0xff]
    %v37 = vld [vmem:[%s1 + $0x50] sm:$0xff]
    %v38 = vld [vmem:[%s1 + $0x58] sm:$0xff]
    %v39 = vld [vmem:[%s2] sm:$0x3]
    %v41 = vlaneseq
    %v42 = vshrl.u32 %v41, 7
    %v43 = vsub.s32 0, %v42
    %v44 = vrot.slane %v39, %v43
    %v45 = vlaneseq
    %v46 = vshrl.u32 %v45, 7
    %v47 = vsub.s32 1, %v46
    %v48 = vrot.slane %v39, %v47
    %v63 = vunpack.c.l.b16 %v27
    %v64 = vunpack.c.h.b16 %v27
    %v65 = vunpack.c.l.b16 %v28
    %v66 = vunpack.c.h.b16 %v28
    %v67 = vunpack.c.l.b16 %v29
    %v68 = vunpack.c.h.b16 %v29
    %v69 = vunpack.c.l.b16 %v30
    %v70 = vunpack.c.h.b16 %v30
    %v71 = vunpack.c.l.b16 %v31
    %v72 = vunpack.c.h.b16 %v31
    %v73 = vunpack.c.l.b16 %v32
    %v74 = vunpack.c.h.b16 %v32
    %v75 = vunpack.c.l.b16 %v33
    %v76 = vunpack.c.h.b16 %v33
    %v77 = vunpack.c.l.b16 %v34
    %v78 = vunpack.c.h.b16 %v34
    %v79 = vunpack.c.l.b16 %v35
    %v80 = vunpack.c.h.b16 %v35
    %v81 = vunpack.c.l.b16 %v36
    %v82 = vunpack.c.h.b16 %v36
    %v83 = vunpack.c.l.b16 %v37
    %v84 = vunpack.c.h.b16 %v37
    %v85 = vunpack.c.l.b16 %v38
    %v86 = vunpack.c.h.b16 %v38
    %v87 = vpack.c.b16 %v65, %v63
    %v88 = vpack.c.b16 %v66, %v64
    %v89 = vpack.c.b16 %v69, %v67
    %v90 = vpack.c.b16 %v70, %v68
    %v91 = vpack.c.b16 %v73, %v71
    %v92 = vpack.c.b16 %v74, %v72
    %v93 = vpack.c.b16 %v77, %v75
    %v94 = vpack.c.b16 %v78, %v76
    %v95 = vpack.c.b16 %v81, %v79
    %v96 = vpack.c.b16 %v82, %v80
    %v97 = vpack.c.b16 %v85, %v83
    %v98 = vpack.c.b16 %v86, %v84
    %vm111 = vcmask 785408
    %v113 = vsel %vm111, %v26, 0
    %115 = vmatprep.subr.bf16.mxu0 %v88
    %116 = vmatpush1.bf16.msra.mxu0 %v87
    %117 = vmatprep.subr.bf16.mxu0 %v90
    %118 = vmatpush1.bf16.msra.mxu0 %v89
    %119 = vmatprep.subr.bf16.mxu0 %v92
    %120 = vmatpush1.bf16.msra.mxu0 %v91
    %121 = vmatprep.subr.bf16.mxu0 %v94
    %122 = vmatpush1.bf16.msra.mxu0 %v93
    %123 = vmatprep.subr.bf16.mxu0 %v96
    %124 = vmatpush1.bf16.msra.mxu0 %v95
    %125 = vmatprep.subr.bf16.mxu0 %v98
    %126 = vmatpush1.bf16.msra.mxu0 %v97
    %127 = vmatprep.subr.bf16.mxu0 0
    %128 = vmatpush1.bf16.msra.mxu0 0
    %129 = vmatprep.subr.bf16.mxu0 0
    %130 = vmatpush1.bf16.msra.mxu0 0
    %131 = vmatprep.subr.bf16.mxu0 0
    %132 = vmatpush1.bf16.msra.mxu0 0
    %133 = vmatprep.subr.bf16.mxu0 0
    %134 = vmatpush1.bf16.msra.mxu0 0
    %135 = vmatprep.subr.bf16.mxu0 0
    %136 = vmatpush1.bf16.msra.mxu0 0
    %137 = vmatprep.subr.bf16.mxu0 0
    %138 = vmatpush1.bf16.msra.mxu0 0
    %139 = vmatprep.subr.bf16.mxu0 0
    %140 = vmatpush1.bf16.msra.mxu0 0
    %141 = vmatprep.subr.bf16.mxu0 0
    %142 = vmatpush1.bf16.msra.mxu0 0
    %143 = vmatprep.subr.bf16.mxu0 0
    %144 = vmatpush1.bf16.msra.mxu0 0
    %145 = vmatprep.subr.bf16.mxu0 0
    %146 = vmatpush1.bf16.msra.mxu0 0
    %147 = vmatprep.mubr.bf16.mxu0 0
    %148 = vmatmul.mubr.bf16.gmra.mrb[0].mxu0 %v113
    %v149 = vpop.f32.mrb[0].mxu0
    %v150 = vadd.f32 %v44, %v149
    %v151 = vpop.f32.mrb[0].mxu0
    %v152 = vadd.f32 %v48, %v151
    %v153 = vpop.f32.mrb[0].mxu0
    %v154 = vpop.f32.mrb[0].mxu0
    %155 = vdwg.mxu0
    %v156 = vmax.f32 %v150, 0.0
    %v157 = vmax.f32 %v152, 0.0
    %v158 = vld [vmem:[%s3] sm:$0xf]
    %v159 = vunpack.c.0.s8 %v158
    %v160 = vunpack.c.1.s8 %v158
    %v161 = vcvt.s32.f32 %v159
    %v162 = vcvt.s32.f32 %v160
    %v163 = vadd.f32 %v156, %v161
    %v164 = vadd.f32 %v157, %v162
    %v165 = vld [vmem:[#allocation3] sm:$0xff]
    %v166 = vmax.f32 %v163, %v164
    %167 = vmax.xlane.f32.xlu0 %v166
    %v168 = vpop.xlane.xlu0 %167
    %v169 = vmax.f32 %v165, %v168
    %v170 = vld [vmem:[#allocation4] sm:$0xff]
    %v171 = vsub.f32 %v165, %v169
    %v172 = vmul.f32 %v171, 1.442695
    %v173 = vpow.pop %v172
    %v174 = vmul.f32 %v170, %v173
    %176 = vset.pattern.permute.xlu0 0
    %177 = vperm.xlu0 %176, %v169
    %v178 = vpop.permute.xlu0 %177
    %v180 = vsub.f32 %v163, %v178
    %v181 = vsub.f32 %v164, %v178
    %v182 = vmul.f32 %v180, 1.442695
    %v183 = vpow.pop %v182
    %v184 = vmul.f32 %v181, 1.442695
    %v185 = vpow.pop %v184
    %v186 = vadd.f32 %v183, %v185
    %187 = vadd.xlane.f32.xlu0 %v186
    %v188 = vpop.xlane.xlu0 %187
    %v189 = vadd.f32 %v174, %v188
    %vm190 = vcmask 7168
    %191 = vst.msk [vmem:[#allocation4] sm:$0xff] %vm190, %v189
    %192 = vst.msk [vmem:[#allocation3] sm:$0xff] %vm190, %v169
    %s193 = smul.u32 0, 2
    %s194 = smul.addr %s193, 8
    %s195 = scalar_lea.vmem [#allocation2], %s194
    %196 = vst [vmem:[%s195] sm:$0xff] %v163
    %197 = vst [vmem:[%s195 + $0x8] sm:$0xff] %v164
    // Predicated region
    $region22: #{global_mode_forward.1} parent=1 // pred_check
      %p198 = pneg %p19
    $region23: #{global_mode_forward.1} parent=1 // pred_check_branch
      %200 = sbr.rel (%p198) target = $region25
    $region24: #{global_mode_forward.1} parent=1 // pred_region
      %v201 = vld [vmem:[#allocation3] sm:$0xff]
      %v202 = vld [vmem:[#allocation4] sm:$0xff]
      %v203 = vrcp.pop %v202
      %v204 = vld [vmem:[#allocation2] sm:$0xff]
      %v205 = vld [vmem:[#allocation2 + $0x8] sm:$0xff]
      %207 = vset.pattern.permute.xlu0 0
      %208 = vperm.xlu0 %207, %v201
      %v209 = vpop.permute.xlu0 %208
      %v211 = vsub.f32 %v204, %v209
      %v212 = vsub.f32 %v205, %v209
      %v213 = vmul.f32 %v211, 1.442695
      %v214 = vpow.pop %v213
      %v215 = vmul.f32 %v212, 1.442695
      %v216 = vpow.pop %v215
      %218 = vset.pattern.permute.xlu0 0
      %219 = vperm.xlu0 %218, %v203
      %v220 = vpop.permute.xlu0 %219
      %v222 = vmul.f32 %v214, %v220
      %v223 = vmul.f32 %v216, %v220
      %224 = vst [vmem:[#allocation5] sm:$0xff] %v222
      %225 = vst [vmem:[#allocation5 + $0x8] sm:$0xff] %v223
    $region25: #{global_mode_forward.1} parent=1 // pred_fallthru
      _
    // Predicated region
    $region26: #{global_mode_forward.1} parent=1 // pred_check
      _
    $region27: #{global_mode_forward.1} parent=1 // pred_check_branch
      %227 = sbr.rel (0) target = $region29
    $region28: #{global_mode_forward.1} parent=1 // pred_region
      %s229 = ssub.s32 256, 256
      %230 = vsyncadd [#allocation6], %s229
      %s232 = sshll.u32 [#allocation5], 4
      %s233 = int_to_ptr.vmem [resolvable:$true] %s232
      %235 = dma.vmem_to_hbm [thread:$0]  %s233, 256, %s4, [#allocation6]
    $region29: #{global_mode_forward.1} parent=1 // pred_fallthru
      _
    // Predicated region
    $region30: #{global_mode_forward.1} parent=1 // pred_check
      _
    $region31: #{global_mode_forward.1} parent=1 // pred_check_branch
      %237 = sbr.rel (0) target = $region33
    $region32: #{global_mode_forward.1} parent=1 // pred_region
      %238 = dma.done [#allocation6], 256
    $region33: #{global_mode_forward.1} parent=1 // pred_fallthru
      _
    %239 = vsyncpa [#allocation6], 1

</llo_original>
